<compile_context>
chip_gen: v5e
topology: v5e:2x2
jax: 0.10.0
libtpu: 0.0.40
codegen_flags: <defaults>
</compile_context>

<pallas_src>
import jax
import jax.numpy as jnp
from jax.experimental import pallas as pl
from jax.experimental.pallas import tpu as pltpu

_TARGET_TILE_BYTES = 1 << 20  # ~1 MiB per operand tile (safe on v5e/v6e/v7x)


# ---------------------------------------------------------------------------
# Pallas kernel: elementwise add on one (block_rows, lane) tile
# ---------------------------------------------------------------------------
def _residual_add_kernel(a_ref, b_ref, o_ref):
    o_ref[...] = a_ref[...] + b_ref[...]


def _sublane_multiple(dtype):
    itemsize = jnp.dtype(dtype).itemsize
    return {4: 8, 2: 16, 1: 32}.get(itemsize, 8)


def _residual_add_2d(a2d, b2d, block_rows):
    rows, lanes = a2d.shape
    grid = (pl.cdiv(rows, block_rows),)
    spec = pl.BlockSpec((block_rows, lanes), lambda i: (i, 0))
    n = rows * lanes
    itemsize = jnp.dtype(a2d.dtype).itemsize
    return pl.pallas_call(
        _residual_add_kernel,
        out_shape=jax.ShapeDtypeStruct((rows, lanes), a2d.dtype),
        grid_spec=pltpu.PrefetchScalarGridSpec(
            num_scalar_prefetch=0,
            grid=grid,
            in_specs=[spec, spec],
            out_specs=spec,
        ),
        compiler_params=pltpu.CompilerParams(
            dimension_semantics=("parallel",),
        ),
        cost_estimate=pl.CostEstimate(
            flops=n, transcendentals=0, bytes_accessed=3 * n * itemsize),
    )(a2d, b2d)


# ---------------------------------------------------------------------------
# Wrapper: matches Residual.forward(input1, input2) -> input1 + input2
# ---------------------------------------------------------------------------
def residual_forward(input1, input2):
    """Elementwise residual add (rule='gradient') matching torch `a + b`."""
    assert input1.shape == input2.shape, "residual add expects matching shapes"
    out_dtype = jnp.result_type(input1.dtype, input2.dtype)
    a = input1.astype(out_dtype)  # no-op when dtypes already match
    b = input2.astype(out_dtype)
    orig_shape = a.shape

    flat_a = a.reshape(-1)
    flat_b = b.reshape(-1)
    n = flat_a.shape[0]
    itemsize = jnp.dtype(out_dtype).itemsize
    sub = _sublane_multiple(out_dtype)        # packed sublane multiple
    min_tile = sub * 128                      # one packed vreg worth of elems

    # Pad ONLY when the flat size is not already vreg-aligned (rare for NCHW).
    pad = (-n) % min_tile
    if pad:
        flat_a = jnp.pad(flat_a, (0, pad))
        flat_b = jnp.pad(flat_b, (0, pad))
    n_p = n + pad

    # Widest lane dimension (multiple of 128) keeping rows a multiple of `sub`.
    lane = 128
    for w in (4096, 2048, 1024, 512, 256):
        if n_p % (w * sub) == 0:
            lane = w
            break
    rows = n_p // lane

    # ~1 MiB per operand tile, rows rounded to the packed sublane multiple.
    target_rows = max(sub, (_TARGET_TILE_BYTES // (lane * itemsize)) // sub * sub)
    block_rows = min(target_rows, rows)

    out2d = _residual_add_2d(
        flat_a.reshape(rows, lane),
        flat_b.reshape(rows, lane),
        block_rows,
    )

    out_flat = out2d.reshape(-1)
    if pad:
        out_flat = out_flat[:n]
    return out_flat.reshape(orig_shape)


if __name__ == "__main__":
    key = jax.random.PRNGKey(0)
    k1, k2 = jax.random.split(key)

    # small NCHW inputs: batch=2, channels=4, spatial=16x16
    x1 = jax.random.normal(k1, (2, 4, 16, 16), dtype=jnp.float32)
    x2 = jax.random.normal(k2, (2, 4, 16, 16), dtype=jnp.float32)

    out = residual_forward(x1, x2)
    jax.block_until_ready(out)

    ref = x1 + x2
    assert out.shape == ref.shape
    assert out.dtype == ref.dtype
    assert jnp.allclose(out, ref, atol=1e-6), "mismatch vs reference add (f32)"

    # exercise the packed-dtype path (sublane multiple = 16 for bf16)
    x1b = x1.astype(jnp.bfloat16)
    x2b = x2.astype(jnp.bfloat16)
    outb = residual_forward(x1b, x2b)
    jax.block_until_ready(outb)
    refb = x1b + x2b
    assert outb.dtype == jnp.bfloat16
    assert jnp.allclose(outb.astype(jnp.float32), refb.astype(jnp.float32),
                        atol=1e-2), "mismatch vs reference add (bf16)"

    print("KERNEL_OK")
</pallas_src>

<mosaic_0001>
module attributes {stable_mosaic.version = 11 : i64} {
  func.func @_residual_add_kernel(%arg0: i32, %arg1: memref<8x256xf32, #tpu.memory_space<vmem>>, %arg2: memref<8x256xf32, #tpu.memory_space<vmem>>, %arg3: memref<8x256xf32, #tpu.memory_space<vmem>>) attributes {dimension_semantics = [#tpu.dimension_semantics<parallel>], iteration_bounds = array<i64: 1>, scalar_prefetch = 0 : i64, scratch_operands = 0 : i64, tpu.core_type = #tpu.core_type<tc>, window_params = [{transform_indices = @transform_0, window_bounds = array<i64: 8, 256>}, {transform_indices = @transform_1, window_bounds = array<i64: 8, 256>}, {transform_indices = @transform_2, window_bounds = array<i64: 8, 256>}]} {
    %c0 = arith.constant 0 : index
    %c0_0 = arith.constant 0 : index
    %0 = vector.load %arg1[%c0, %c0_0] : memref<8x256xf32, #tpu.memory_space<vmem>>, vector<8x256xf32>
    %c0_1 = arith.constant 0 : index
    %c0_2 = arith.constant 0 : index
    %1 = vector.load %arg2[%c0_1, %c0_2] : memref<8x256xf32, #tpu.memory_space<vmem>>, vector<8x256xf32>
    %2 = arith.addf %0, %1 : vector<8x256xf32>
    %c0_3 = arith.constant 0 : index
    %c0_4 = arith.constant 0 : index
    %3 = vector.load %arg3[%c0_3, %c0_4] : memref<8x256xf32, #tpu.memory_space<vmem>>, vector<8x256xf32>
    tpu.vector_store %arg3[%c0_3, %c0_4], %2 {strides = array<i32>} : memref<8x256xf32, #tpu.memory_space<vmem>>, vector<8x256xf32>,
    return
  }
  func.func @transform_0(%arg0: i32) -> (i32, i32) {
    %c0_i32 = arith.constant 0 : i32
    %c0_i32_0 = arith.constant 0 : i32
    return %arg0, %c0_i32 : i32, i32
  }
  func.func @transform_1(%arg0: i32) -> (i32, i32) {
    %c0_i32 = arith.constant 0 : i32
    %c0_i32_0 = arith.constant 0 : i32
    return %arg0, %c0_i32 : i32, i32
  }
  func.func @transform_2(%arg0: i32) -> (i32, i32) {
    %c0_i32 = arith.constant 0 : i32
    %c0_i32_0 = arith.constant 0 : i32
    return %arg0, %c0_i32 : i32, i32
  }
}

</mosaic_0001>

<llo_original>
// kernel: tpu_custom_call.1
$region0: #{tpu_custom_call.1}
  #allocation0 [shape = 'u32[]', space=smem, size = 0x4, offset = 0x4, fixed_abs, tag = 'smem constant byte address 0x4 - core index']
  #allocation1 [shape = 'u32[72,128]{1,0:T(1,128)}', space=vmem, size = 0x9000, scoped, tag = 'internal scratch']
  %s0 = inlined_call_operand.hbm [shape: f32[8,256], index: 0, kind: input, shape index: {}]
  %s1 = inlined_call_operand.hbm [shape: f32[8,256], index: 1, kind: input, shape index: {}]
  %s2 = inlined_call_operand.hbm [shape: f32[8,256], index: 2, kind: output, shape index: {}]
  %s3 = sld [smem:[#allocation0]]
  $region26: #{tpu_custom_call.1} parent=0
    _
  %s5 = ssub.s32 1, %s3
  %s6 = scalar_select 0, %s5, %s3
  $region1: #{tpu_custom_call.1} parent=0
    #allocation2 [shape = 'u8[8192]{0}', space=vmem, size = 0x2000, scoped, tag = 'input window, operand 0, single buffered']
    #allocation3 [shape = 's32[1]{0}', space=sflag, size = 0x4, scoped, tag = 'scoped memory for tpu_custom_call.1']
    #allocation4 [shape = 's32[1]{0}', space=sflag, size = 0x4, scoped, tag = 'scoped memory for tpu_custom_call.1']
    #allocation5 [shape = 'u8[8192]{0}', space=vmem, size = 0x2000, scoped, tag = 'input window, operand 1, single buffered']
    #allocation6 [shape = 's32[1]{0}', space=sflag, size = 0x4, scoped, tag = 'scoped memory for tpu_custom_call.1']
    #allocation7 [shape = 'u8[8192]{0}', space=vmem, size = 0x2000, scoped, tag = 'output window, operand 0, single buffered']
    %7 = vsyncpa [#allocation3], 0
    %8 = vsyncpa [#allocation6], 0
    %9 = vsyncpa [#allocation4], 0
    // Predicated region
    $region2: #{tpu_custom_call.1} parent=1 // pred_check
      _
    $region3: #{tpu_custom_call.1} parent=1 // pred_check_branch
      %11 = sbr.rel (0) target = $region5
    $region4: #{tpu_custom_call.1} parent=1 // pred_region
      %13 = vsyncadd [#allocation3], 0
      %s15 = sshll.u32 %s0, 4
      %s16 = int_to_ptr.hbm [resolvable:$true] %s15
      %s17 = sshll.u32 [#allocation2], 4
      %s18 = int_to_ptr.vmem [resolvable:$true] %s17
      %20 = dma.hbm_to_vmem [thread:$0]  %s16, 256, %s18, [#allocation3]
    $region5: #{tpu_custom_call.1} parent=1 // pred_fallthru
      _
    // Predicated region
    $region6: #{tpu_custom_call.1} parent=1 // pred_check
      _
    $region7: #{tpu_custom_call.1} parent=1 // pred_check_branch
      %22 = sbr.rel (0) target = $region9
    $region8: #{tpu_custom_call.1} parent=1 // pred_region
      %24 = vsyncadd [#allocation6], 0
      %s26 = sshll.u32 %s1, 4
      %s27 = int_to_ptr.hbm [resolvable:$true] %s26
      %s28 = sshll.u32 [#allocation5], 4
      %s29 = int_to_ptr.vmem [resolvable:$true] %s28
      %31 = dma.hbm_to_vmem [thread:$0]  %s27, 256, %s29, [#allocation6]
    $region9: #{tpu_custom_call.1} parent=1 // pred_fallthru
      _
    // Predicated region
    $region10: #{tpu_custom_call.1} parent=1 // pred_check
      _
    $region11: #{tpu_custom_call.1} parent=1 // pred_check_branch
      %33 = sbr.rel (0) target = $region13
    $region12: #{tpu_custom_call.1} parent=1 // pred_region
      %35 = dma.done [#allocation3], 256
    $region13: #{tpu_custom_call.1} parent=1 // pred_fallthru
      _
    // Predicated region
    $region14: #{tpu_custom_call.1} parent=1 // pred_check
      _
    $region15: #{tpu_custom_call.1} parent=1 // pred_check_branch
      %37 = sbr.rel (0) target = $region17
    $region16: #{tpu_custom_call.1} parent=1 // pred_region
      %39 = dma.done [#allocation6], 256
    $region17: #{tpu_custom_call.1} parent=1 // pred_fallthru
      _
    %v40 = vld [vmem:[#allocation2] sm:$0xff]
    %v41 = vld [vmem:[#allocation2 + $0x8] sm:$0xff]
    %v42 = vld [vmem:[#allocation5] sm:$0xff]
    %v43 = vld [vmem:[#allocation5 + $0x8] sm:$0xff]
    %v44 = vadd.f32 %v40, %v42
    %v45 = vadd.f32 %v41, %v43
    %46 = vst [vmem:[#allocation7] sm:$0xff] %v44
    %47 = vst [vmem:[#allocation7 + $0x8] sm:$0xff] %v45
    // Predicated region
    $region18: #{tpu_custom_call.1} parent=1 // pred_check
      _
    $region19: #{tpu_custom_call.1} parent=1 // pred_check_branch
      %49 = sbr.rel (0) target = $region21
    $region20: #{tpu_custom_call.1} parent=1 // pred_region
      %51 = vsyncadd [#allocation4], 0
      %s53 = sshll.u32 [#allocation7], 4
      %s54 = int_to_ptr.vmem [resolvable:$true] %s53
      %s55 = sshll.u32 %s2, 4
      %s56 = int_to_ptr.hbm [resolvable:$true] %s55
      %58 = dma.vmem_to_hbm [thread:$0]  %s54, 256, %s56, [#allocation4]
    $region21: #{tpu_custom_call.1} parent=1 // pred_fallthru
      _
    // Predicated region
    $region22: #{tpu_custom_call.1} parent=1 // pred_check
      _
    $region23: #{tpu_custom_call.1} parent=1 // pred_check_branch
      %60 = sbr.rel (0) target = $region25
    $region24: #{tpu_custom_call.1} parent=1 // pred_region
      %62 = dma.done [#allocation4], 256
    $region25: #{tpu_custom_call.1} parent=1 // pred_fallthru
      _
    %63 = vsyncpa [#allocation3], 1
    %64 = vsyncpa [#allocation6], 1
    %65 = vsyncpa [#allocation4], 1

</llo_original>
